<compile_context>
chip_gen: v7x
topology: tpu7x:2x2x1
jax: 0.10.0
libtpu: 0.0.40
codegen_flags: <defaults>
</compile_context>

<pallas_src>
import jax
import jax.numpy as jnp
from jax.experimental import pallas as pl
from jax.experimental.pallas import tpu as pltpu

LANE = 128
EPS = 1e-12


def _round_up(x, m):
    return (x + m - 1) // m * m


def gru_seq_kernel(x_ref, w_ih_ref, w_hh_ref, b_i_ref, b_hn_ref, h0_ref,
                   out_ref, xproj_ref):
    """One GRU layer over T steps; hidden state carried through an in-kernel loop.

    x_ref    : (T, E)      bf16 embedded tokens
    w_ih_ref : (E, 3*Hp)   bf16 fused input weights, gates [r|z|n], each padded to Hp lanes
    w_hh_ref : (Hp, 3*Hp)  bf16 fused hidden weights, same layout, pad rows/cols zeroed
    b_i_ref  : (1, 3*Hp)   f32  [b_ir+b_hr | b_iz+b_hz | b_in], pad lanes zero
    b_hn_ref : (1, Hp)     f32  b_hn (kept separate: multiplied by r), pad lanes zero
    h0_ref   : (1, Hp)     f32  initial hidden, pad lanes zero
    out_ref  : (rows, Hp)  f32  rows 0..T-1 = per-step GRU outputs (pre-norm),
                                row T = final L2-normalized hidden, rows > T zeroed
    xproj_ref: (T, 3*Hp)   f32  scratch for the hoisted input-side projection
    """
    T = x_ref.shape[0]
    Hp = h0_ref.shape[-1]

    # Hoisted input projection: one (T,E)x(E,3Hp) bf16 MXU matmul (M=T), f32 accumulate.
    xproj_ref[...] = (
        jnp.dot(x_ref[...], w_ih_ref[...], preferred_element_type=jnp.float32)
        + b_i_ref[...])

    b_hn = b_hn_ref[...]

    def step(t, carry):
        h, inv = carry  # h: un-normalized previous GRU output; inv: 1/||h|| (1.0 for h0)
        # Recurrent matmul on the *raw* h; apply inv afterwards: (inv*h)@W == inv*(h@W).
        # Keeps last step's reduce/rsqrt out of this matmul's input dependencies.
        # W_hh re-read from VMEM each step -> bounded vreg pressure at production H.
        # TODO(synk): for tiny H a VPU broadcast-mul + sublane reduce could replace this
        # M=1 MXU matmul; kept on the MXU for generality.
        hp = inv * jnp.dot(h.astype(jnp.bfloat16), w_hh_ref[...],
                           preferred_element_type=jnp.float32)            # (1, 3Hp)
        h_prev = inv * h                                                   # normalized prev
        xp = xproj_ref[pl.ds(t, 1), :]                                     # (1, 3Hp)
        # Gate slices start at 128-lane boundaries -> pure VPU gate math.
        r = jax.nn.sigmoid(xp[:, 0:Hp] + hp[:, 0:Hp])
        z = jax.nn.sigmoid(xp[:, Hp:2 * Hp] + hp[:, Hp:2 * Hp])
        n = jnp.tanh(xp[:, 2 * Hp:3 * Hp] + r * (hp[:, 2 * Hp:3 * Hp] + b_hn))
        h_new = (1.0 - z) * n + z * h_prev                                 # GRU output
        out_ref[pl.ds(t, 1), :] = h_new
        # Norm factor for the *next* step; not a dependency of the next MXU push.
        # TODO(synk): PyTorch divides by the exact norm; rsqrt(sum + 1e-12) differs only
        # when ||h|| ~ 0 (deliberate guard).
        inv_new = jax.lax.rsqrt(jnp.sum(h_new * h_new, keepdims=True) + EPS)
        return h_new, inv_new

    h0 = h0_ref[...].astype(jnp.float32)
    inv0 = jnp.ones((1, 1), jnp.float32)   # the provided initial hidden is used as-is
    h_last, inv_last = jax.lax.fori_loop(0, T, step, (h0, inv0),
                                         unroll=max(1, min(T, 8)))
    out_ref[pl.ds(T, 1), :] = h_last * inv_last    # module's new_hidden (normalized)

    rows = out_ref.shape[0]
    if T + 1 < rows:   # static: zero the sublane-padding tail rows
        out_ref[pl.ds(T + 1, rows - (T + 1)), :] = jnp.zeros(
            (rows - (T + 1), Hp), jnp.float32)


def _gru_pallas(x_emb_bf16, h0_pad, params):
    """Run the fused GRU kernel over a (T, E) bf16 sequence; returns (rows, Hp) f32."""
    T = x_emb_bf16.shape[0]
    Hp = h0_pad.shape[-1]
    rows = _round_up(T + 1, 8)               # sublane-aligned packed output
    vmem = pl.BlockSpec(memory_space=pltpu.MemorySpace.VMEM)
    return pl.pallas_call(
        gru_seq_kernel,
        out_shape=jax.ShapeDtypeStruct((rows, Hp), jnp.float32),
        in_specs=[vmem] * 6,
        out_specs=vmem,
        scratch_shapes=[pltpu.VMEM((T, 3 * Hp), jnp.float32)],
        # Explicit scoped-VMEM budget (defaults: 16 MiB v5e / 32 MiB v6e,v7x).
        # TODO(synk): at production H/T, chunk the hoisted projection over T and budget
        # resident weights + xproj against v7x's 64 MiB physical VMEM; batch independent
        # sequences over a "parallel" grid axis to use the second v7x TensorCore.
        compiler_params=pltpu.CompilerParams(vmem_limit_bytes=32 * 1024 * 1024),
    )(x_emb_bf16, params["w_ih"], params["w_hh"],
      params["b_i"], params["b_hn"], h0_pad)


def make_encoder_params(input_size, embedding_size, hidden_size, key):
    """Synthetic params matching nn.Embedding + nn.GRU, plus fused/lane-padded layout."""
    H = hidden_size
    Hp = _round_up(H, LANE)
    ks = jax.random.split(key, 5)
    emb = jax.random.normal(ks[0], (input_size, embedding_size), jnp.float32)
    # PyTorch layout: weight_ih_l0 (3H, E), weight_hh_l0 (3H, H), gate order [r, z, n].
    w_ih = jax.random.normal(ks[1], (3 * H, embedding_size), jnp.float32) * 0.1
    w_hh = jax.random.normal(ks[2], (3 * H, H), jnp.float32) * 0.1
    b_ih = jax.random.normal(ks[3], (3 * H,), jnp.float32) * 0.1
    b_hh = jax.random.normal(ks[4], (3 * H,), jnp.float32) * 0.1

    def pad_gate_cols(m):   # (rows, 3H) -> (rows, 3Hp); each gate starts at a 128-lane offset
        pad = jnp.zeros((m.shape[0], Hp - H), m.dtype)
        return jnp.concatenate(
            [m[:, 0:H], pad, m[:, H:2 * H], pad, m[:, 2 * H:3 * H], pad], axis=1)

    w_ih_f = pad_gate_cols(w_ih.T)                                          # (E, 3Hp)
    w_hh_f = pad_gate_cols(w_hh.T)                                          # (H, 3Hp)
    w_hh_f = jnp.concatenate(
        [w_hh_f, jnp.zeros((Hp - H, 3 * Hp), jnp.float32)], axis=0)         # (Hp, 3Hp)
    b_i = pad_gate_cols(jnp.concatenate(
        [b_ih[0:H] + b_hh[0:H],               # r: fold both biases
         b_ih[H:2 * H] + b_hh[H:2 * H],       # z: fold both biases
         b_ih[2 * H:3 * H]]).reshape(1, 3 * H))                             # (1, 3Hp)
    b_hn = jnp.zeros((1, Hp), jnp.float32).at[0, 0:H].set(b_hh[2 * H:3 * H])

    return dict(
        H=H, Hp=Hp,
        embedding=emb,
        w_ih=w_ih_f.astype(jnp.bfloat16),     # bf16 MXU operands
        w_hh=w_hh_f.astype(jnp.bfloat16),
        b_i=b_i,                               # f32 (added post-accumulation)
        b_hn=b_hn,
        # Raw PyTorch-layout copies, used only by the pure-JAX reference checks.
        _w_ih_raw=w_ih, _w_hh_raw=w_hh, _b_ih_raw=b_ih, _b_hh_raw=b_hh,
    )


def _pad_hidden(hidden, H, Hp):
    return jnp.zeros((1, Hp), jnp.float32).at[:, 0:H].set(
        hidden.reshape(1, H).astype(jnp.float32))


def encoder_forward(token_id, hidden, params):
    """Mirrors Encoder.forward for one token: returns (out, new_hidden), each (1,1,H).

    Prefer encoder_forward_sequence for autoregressive use: the T=1 path re-stages the
    weights into VMEM and pays full pallas_call overhead per token.
    """
    H, Hp = params["H"], params["Hp"]
    emb = params["embedding"][token_id].reshape(1, -1).astype(jnp.bfloat16)
    packed = _gru_pallas(emb, _pad_hidden(hidden, H, Hp), params)
    return (packed[0:1, 0:H].reshape(1, 1, H),
            packed[1:2, 0:H].reshape(1, 1, H))


def encoder_forward_sequence(token_ids, hidden, params):
    """Encoder.forward applied over a whole token sequence with ONE pallas_call.

    Semantically identical to calling encoder_forward per token and feeding the
    normalized new_hidden back in.  Returns (outs: (T,1,H), new_hidden: (1,1,H)).
    """
    H, Hp = params["H"], params["Hp"]
    T = token_ids.shape[0]
    # TODO(synk): the nn.Embedding gather of T dynamic rows stays as one plain-JAX take
    # feeding the kernel; a multi-row data-dependent gather has no clean BlockSpec form.
    emb = params["embedding"][token_ids].astype(jnp.bfloat16)           # (T, E)
    packed = _gru_pallas(emb, _pad_hidden(hidden, H, Hp), params)       # (rows, Hp)
    return (packed[0:T, 0:H].reshape(T, 1, H),
            packed[T:T + 1, 0:H].reshape(1, 1, H))


def _mirror_sequence(x_bf16, h0_pad, params):
    """Plain-JAX mirror of the kernel's numerics (bf16 operands, inv-factored norm)."""
    Hp = params["Hp"]
    PREC = jax.lax.Precision.HIGHEST
    w_ih = params["w_ih"].astype(jnp.float32)
    w_hh = params["w_hh"].astype(jnp.float32)
    xproj = jnp.dot(x_bf16.astype(jnp.float32), w_ih, precision=PREC) + params["b_i"]
    h, inv = h0_pad, jnp.ones((1, 1), jnp.float32)
    outs = []
    for t in range(x_bf16.shape[0]):
        hp = inv * jnp.dot(h.astype(jnp.bfloat16).astype(jnp.float32), w_hh,
                           precision=PREC)
        h_prev = inv * h
        xp = xproj[t:t + 1]
        r = jax.nn.sigmoid(xp[:, 0:Hp] + hp[:, 0:Hp])
        z = jax.nn.sigmoid(xp[:, Hp:2 * Hp] + hp[:, Hp:2 * Hp])
        n = jnp.tanh(xp[:, 2 * Hp:3 * Hp] + r * (hp[:, 2 * Hp:3 * Hp] + params["b_hn"]))
        h = (1.0 - z) * n + z * h_prev
        inv = jax.lax.rsqrt(jnp.sum(h * h, keepdims=True) + EPS)
        outs.append(h)
    return jnp.concatenate(outs, axis=0), h * inv


def _torch_reference_sequence(token_ids, h0, params):
    """PyTorch-faithful f32 reference (unfused weights, normalize-then-matmul order)."""
    H = params["H"]
    PREC = jax.lax.Precision.HIGHEST
    h = h0
    outs = []
    for tid in token_ids:
        x = params["embedding"][int(tid)].reshape(1, -1)
        gi = jnp.dot(x, params["_w_ih_raw"].T, precision=PREC) + params["_b_ih_raw"]
        gh = jnp.dot(h, params["_w_hh_raw"].T, precision=PREC) + params["_b_hh_raw"]
        r = jax.nn.sigmoid(gi[:, 0:H] + gh[:, 0:H])
        z = jax.nn.sigmoid(gi[:, H:2 * H] + gh[:, H:2 * H])
        n = jnp.tanh(gi[:, 2 * H:3 * H] + r * gh[:, 2 * H:3 * H])
        h_new = (1.0 - z) * n + z * h
        outs.append(h_new)
        h = h_new / jnp.linalg.norm(h_new)
    return jnp.concatenate(outs, axis=0), h


if __name__ == "__main__":
    input_size = 10        # vocab size
    embedding_size = 16
    hidden_size = 32
    seq_len = 8

    key = jax.random.PRNGKey(0)
    pkey, tkey = jax.random.split(key)
    params = make_encoder_params(input_size, embedding_size, hidden_size, pkey)
    H, Hp = params["H"], params["Hp"]

    token_ids = jax.random.randint(tkey, (seq_len,), 0, input_size)
    hidden0 = jnp.zeros((1, 1, hidden_size), jnp.float32)   # Encoder.initHidden()

    # --- exact module forward: one token ----------------------------------------------
    out, new_hidden = encoder_forward(int(token_ids[0]), hidden0, params)
    jax.block_until_ready((out, new_hidden))
    assert out.shape == (1, 1, hidden_size)
    assert new_hidden.shape == (1, 1, hidden_size)

    emb1 = params["embedding"][int(token_ids[0])].reshape(1, -1).astype(jnp.bfloat16)
    m_outs, m_hid = _mirror_sequence(emb1, _pad_hidden(hidden0, H, Hp), params)
    assert jnp.allclose(out.reshape(1, -1), m_outs[0:1, 0:H], atol=2e-4)
    assert jnp.allclose(new_hidden.reshape(1, -1), m_hid[:, 0:H], atol=2e-4)

    # --- fused sequence kernel: all tokens in a single pallas_call --------------------
    outs, new_hidden_seq = encoder_forward_sequence(token_ids, hidden0, params)
    jax.block_until_ready((outs, new_hidden_seq))
    assert outs.shape == (seq_len, 1, hidden_size)
    assert new_hidden_seq.shape == (1, 1, hidden_size)

    emb_seq = params["embedding"][token_ids].astype(jnp.bfloat16)
    m_outs, m_hid = _mirror_sequence(emb_seq, _pad_hidden(hidden0, H, Hp), params)
    assert jnp.allclose(outs.reshape(seq_len, H), m_outs[:, 0:H], atol=2e-4)
    assert jnp.allclose(new_hidden_seq.reshape(1, H), m_hid[:, 0:H], atol=2e-4)

    # --- loose cross-check vs. the PyTorch-faithful f32 order (bf16 rounding bound) ---
    t_outs, t_hid = _torch_reference_sequence(token_ids, hidden0.reshape(1, H), params)
    assert jnp.allclose(outs.reshape(seq_len, H), t_outs, atol=5e-2)
    assert jnp.allclose(new_hidden_seq.reshape(1, H), t_hid, atol=5e-2)

    print("KERNEL_OK")
</pallas_src>

<mosaic_0001>
module attributes {stable_mosaic.version = 11 : i64} {
  func.func @gru_seq_kernel(%arg0: memref<1x16xbf16, #tpu.memory_space<vmem>>, %arg1: memref<16x384xbf16, #tpu.memory_space<vmem>>, %arg2: memref<128x384xbf16, #tpu.memory_space<vmem>>, %arg3: memref<1x384xf32, #tpu.memory_space<vmem>>, %arg4: memref<1x128xf32, #tpu.memory_space<vmem>>, %arg5: memref<1x128xf32, #tpu.memory_space<vmem>>, %arg6: memref<8x128xf32, #tpu.memory_space<vmem>>, %arg7: memref<1x384xf32, #tpu.memory_space<vmem>>) attributes {dimension_semantics = [], scalar_prefetch = 0 : i64, scratch_operands = 1 : i64, tpu.core_type = #tpu.core_type<tc>} {
    %c0 = arith.constant 0 : index
    %c0_0 = arith.constant 0 : index
    %0 = vector.load %arg0[%c0, %c0_0] : memref<1x16xbf16, #tpu.memory_space<vmem>>, vector<1x16xbf16>
    %c0_1 = arith.constant 0 : index
    %c0_2 = arith.constant 0 : index
    %1 = vector.load %arg1[%c0_1, %c0_2] : memref<16x384xbf16, #tpu.memory_space<vmem>>, vector<16x384xbf16>
    %cst = arith.constant dense<0.000000e+00> : vector<1x384xf32>
    %2 = tpu.matmul %0, %1, %cst {dimension_numbers = #tpu.dot_dimension_numbers<[1], [0], [0], [1], [0, 0, 1, 1], [], []>} : vector<1x16xbf16>, vector<16x384xbf16>, vector<1x384xf32> -> vector<1x384xf32>
    %c0_3 = arith.constant 0 : index
    %c0_4 = arith.constant 0 : index
    %3 = vector.load %arg3[%c0_3, %c0_4] : memref<1x384xf32, #tpu.memory_space<vmem>>, vector<1x384xf32>
    %4 = arith.addf %2, %3 : vector<1x384xf32>
    %c0_5 = arith.constant 0 : index
    %c0_6 = arith.constant 0 : index
    %5 = vector.load %arg7[%c0_5, %c0_6] : memref<1x384xf32, #tpu.memory_space<vmem>>, vector<1x384xf32>
    tpu.vector_store %arg7[%c0_5, %c0_6], %4 {strides = array<i32>} : memref<1x384xf32, #tpu.memory_space<vmem>>, vector<1x384xf32>,
    %c0_7 = arith.constant 0 : index
    %c0_8 = arith.constant 0 : index
    %6 = vector.load %arg4[%c0_7, %c0_8] : memref<1x128xf32, #tpu.memory_space<vmem>>, vector<1x128xf32>
    %c0_9 = arith.constant 0 : index
    %c0_10 = arith.constant 0 : index
    %7 = vector.load %arg5[%c0_9, %c0_10] : memref<1x128xf32, #tpu.memory_space<vmem>>, vector<1x128xf32>
    %cst_11 = arith.constant 1.000000e+00 : f32
    %8 = vector.broadcast %cst_11 : f32 to vector<1x1xf32>
    %c0_i32 = arith.constant 0 : i32
    %9 = arith.truncf %7 : vector<1x128xf32> to vector<1x128xbf16>
    %c0_12 = arith.constant 0 : index
    %c0_13 = arith.constant 0 : index
    %10 = vector.load %arg2[%c0_12, %c0_13] : memref<128x384xbf16, #tpu.memory_space<vmem>>, vector<128x384xbf16>
    %cst_14 = arith.constant dense<0.000000e+00> : vector<1x384xf32>
    %11 = tpu.matmul %9, %10, %cst_14 {dimension_numbers = #tpu.dot_dimension_numbers<[1], [0], [0], [1], [0, 0, 1, 1], [], []>} : vector<1x128xbf16>, vector<128x384xbf16>, vector<1x384xf32> -> vector<1x384xf32>
    %12 = vector.broadcast %8 : vector<1x1xf32> to vector<1x384xf32>
    %13 = arith.mulf %12, %11 : vector<1x384xf32>
    %14 = vector.broadcast %8 : vector<1x1xf32> to vector<1x128xf32>
    %15 = arith.mulf %14, %7 : vector<1x128xf32>
    %16 = arith.index_cast %c0_i32 : i32 to index
    %c0_15 = arith.constant 0 : index
    %17 = vector.load %arg7[%16, %c0_15] : memref<1x384xf32, #tpu.memory_space<vmem>>, vector<1x384xf32>
    %18 = vector.extract_strided_slice %17 {offsets = [0, 0], sizes = [1, 128], strides = [1, 1]} : vector<1x384xf32> to vector<1x128xf32>
    %19 = vector.extract_strided_slice %13 {offsets = [0, 0], sizes = [1, 128], strides = [1, 1]} : vector<1x384xf32> to vector<1x128xf32>
    %20 = arith.addf %18, %19 : vector<1x128xf32>
    %21 = arith.negf %20 : vector<1x128xf32>
    %22 = math.exp %21 : vector<1x128xf32>
    %cst_16 = arith.constant 1.000000e+00 : f32
    %23 = vector.broadcast %cst_16 : f32 to vector<1x128xf32>
    %24 = arith.addf %23, %22 : vector<1x128xf32>
    %25 = arith.divf %23, %24 : vector<1x128xf32>
    %26 = vector.extract_strided_slice %17 {offsets = [0, 128], sizes = [1, 128], strides = [1, 1]} : vector<1x384xf32> to vector<1x128xf32>
    %27 = vector.extract_strided_slice %13 {offsets = [0, 128], sizes = [1, 128], strides = [1, 1]} : vector<1x384xf32> to vector<1x128xf32>
    %28 = arith.addf %26, %27 : vector<1x128xf32>
    %29 = arith.negf %28 : vector<1x128xf32>
    %30 = math.exp %29 : vector<1x128xf32>
    %cst_17 = arith.constant 1.000000e+00 : f32
    %31 = vector.broadcast %cst_17 : f32 to vector<1x128xf32>
    %32 = arith.addf %31, %30 : vector<1x128xf32>
    %33 = arith.divf %31, %32 : vector<1x128xf32>
    %34 = vector.extract_strided_slice %17 {offsets = [0, 256], sizes = [1, 128], strides = [1, 1]} : vector<1x384xf32> to vector<1x128xf32>
    %35 = vector.extract_strided_slice %13 {offsets = [0, 256], sizes = [1, 128], strides = [1, 1]} : vector<1x384xf32> to vector<1x128xf32>
    %36 = arith.addf %35, %6 : vector<1x128xf32>
    %37 = arith.mulf %25, %36 : vector<1x128xf32>
    %38 = arith.addf %34, %37 : vector<1x128xf32>
    %39 = math.tanh %38 : vector<1x128xf32>
    %cst_18 = arith.constant 1.000000e+00 : f32
    %40 = vector.broadcast %cst_18 : f32 to vector<1x128xf32>
    %41 = arith.subf %40, %33 : vector<1x128xf32>
    %42 = arith.mulf %41, %39 : vector<1x128xf32>
    %43 = arith.mulf %33, %15 : vector<1x128xf32>
    %44 = arith.addf %42, %43 : vector<1x128xf32>
    %45 = arith.index_cast %c0_i32 : i32 to index
    %c0_19 = arith.constant 0 : index
    %46 = vector.load %arg6[%45, %c0_19] : memref<8x128xf32, #tpu.memory_space<vmem>>, vector<1x128xf32>
    tpu.vector_store %arg6[%45, %c0_19], %44 {strides = array<i32>} : memref<8x128xf32, #tpu.memory_space<vmem>>, vector<1x128xf32>,
    %47 = arith.mulf %44, %44 : vector<1x128xf32>
    %48 = vector.shape_cast %47 : vector<1x128xf32> to vector<1x1x128xf32>
    %cst_20 = arith.constant dense<0.000000e+00> : vector<1xf32>
    %49 = vector.multi_reduction <add>, %48, %cst_20 [1, 2] : vector<1x1x128xf32> to vector<1xf32>
    %50 = vector.shape_cast %49 : vector<1xf32> to vector<1x1x1xf32>
    %51 = vector.extract %50[0, 0, 0] : f32 from vector<1x1x1xf32>
    %52 = vector.broadcast %51 : f32 to vector<1x1xf32>
    %cst_21 = arith.constant 9.99999996E-13 : f32
    %53 = vector.broadcast %cst_21 : f32 to vector<1x1xf32>
    %54 = arith.addf %52, %53 : vector<1x1xf32>
    %55 = math.rsqrt %54 : vector<1x1xf32>
    %c1_i32 = arith.constant 1 : i32
    %56 = vector.broadcast %55 : vector<1x1xf32> to vector<1x128xf32>
    %57 = arith.mulf %44, %56 : vector<1x128xf32>
    %c1 = arith.constant 1 : index
    %c0_22 = arith.constant 0 : index
    %58 = vector.load %arg6[%c1, %c0_22] : memref<8x128xf32, #tpu.memory_space<vmem>>, vector<1x128xf32>
    tpu.vector_store %arg6[%c1, %c0_22], %57 {strides = array<i32>} : memref<8x128xf32, #tpu.memory_space<vmem>>, vector<1x128xf32>,
    %cst_23 = arith.constant 0.000000e+00 : f32
    %59 = vector.broadcast %cst_23 : f32 to vector<6x128xf32>
    %c2 = arith.constant 2 : index
    %c0_24 = arith.constant 0 : index
    %60 = vector.load %arg6[%c2, %c0_24] : memref<8x128xf32, #tpu.memory_space<vmem>>, vector<6x128xf32>
    tpu.vector_store %arg6[%c2, %c0_24], %59 {strides = array<i32>} : memref<8x128xf32, #tpu.memory_space<vmem>>, vector<6x128xf32>,
    return
  }
}

</mosaic_0001>

<llo_original>
// kernel: tpu_custom_call.1
$region0: #{tpu_custom_call.1}
  #allocation0 [shape = 'u32[]', space=smem, size = 0x4, offset = 0x4, fixed_abs, tag = 'smem constant byte address 0x4 - core index']
  #allocation1 [shape = 'u32[144,128]{1,0:T(1,128)}', space=vmem, size = 0x12000, scoped, tag = 'internal scratch']
  #allocation2 [shape = 'f32[1,384]{1,0:T(1,128)}', space=vmem, size = 0x600, scoped, tag = 'scratch operand']
  %s0 = inlined_call_operand.hbm [shape: bf16[1,16], index: 0, kind: input, shape index: {}]
  %s1 = inlined_call_operand.hbm [shape: bf16[16,384], index: 1, kind: input, shape index: {}]
  %s2 = inlined_call_operand.hbm [shape: bf16[128,384], index: 2, kind: input, shape index: {}]
  %s3 = inlined_call_operand.vmem [shape: f32[1,384], index: 3, kind: input, shape index: {}]
  %s4 = inlined_call_operand.vmem [shape: f32[1,128], index: 4, kind: input, shape index: {}]
  %s5 = inlined_call_operand.vmem [shape: f32[1,128], index: 5, kind: input, shape index: {}]
  %s6 = inlined_call_operand.hbm [shape: f32[8,128], index: 6, kind: output, shape index: {}]
  %s7 = sld [smem:[#allocation0]]
  $region46: #{tpu_custom_call.1} parent=0
    _
  %s9 = ssub.s32 1, %s7
  %s10 = scalar_select 0, %s9, %s7
  $region1: #{tpu_custom_call.1} parent=0
    #allocation3 [shape = 'u8[512]{0}', space=vmem, size = 0x400, scoped, tag = 'input window, operand 0, single buffered']
    #allocation4 [shape = 's32[1]{0}', space=sflag, size = 0x4, scoped, tag = 'scoped memory for tpu_custom_call.1']
    #allocation5 [shape = 's32[1]{0}', space=sflag, size = 0x4, scoped, tag = 'scoped memory for tpu_custom_call.1']
    #allocation6 [shape = 'u8[12288]{0}', space=vmem, size = 0x3000, scoped, tag = 'input window, operand 1, single buffered']
    #allocation7 [shape = 's32[1]{0}', space=sflag, size = 0x4, scoped, tag = 'scoped memory for tpu_custom_call.1']
    #allocation8 [shape = 'u8[98304]{0}', space=vmem, size = 0x18000, scoped, tag = 'input window, operand 2, single buffered']
    #allocation9 [shape = 'u8[4096]{0}', space=vmem, size = 0x1000, scoped, tag = 'output window, operand 0, single buffered']
    %11 = vsyncpa [#allocation4], 0
    %12 = vsyncpa [#allocation7], 0
    %13 = vsyncpa [#allocation5], 0
    // Predicated region
    $region2: #{tpu_custom_call.1} parent=1 // pred_check
      _
    $region3: #{tpu_custom_call.1} parent=1 // pred_check_branch
      %15 = sbr.rel (0) target = $region5
    $region4: #{tpu_custom_call.1} parent=1 // pred_region
      %s17 = ssub.s32 16, 16
      %18 = vsyncadd [#allocation4], %s17
      %s20 = sshll.u32 [#allocation3], 4
      %s21 = int_to_ptr.vmem [resolvable:$true] %s20
      %23 = dma.hbm_to_vmem [thread:$0]  %s0, 16, %s21, [#allocation4]
    $region5: #{tpu_custom_call.1} parent=1 // pred_fallthru
      _
    // Predicated region
    $region6: #{tpu_custom_call.1} parent=1 // pred_check
      _
    $region7: #{tpu_custom_call.1} parent=1 // pred_check_branch
      %25 = sbr.rel (0) target = $region9
    $region8: #{tpu_custom_call.1} parent=1 // pred_region
      %s27 = ssub.s32 384, 384
      %28 = vsyncadd [#allocation7], %s27
      %s29 = sshll.u32 [#allocation6], 4
      %s30 = int_to_ptr.vmem [resolvable:$true] %s29
      %35 = dma.hbm_to_vmem [thread:$0]  %s1, 384, %s30, [#allocation7], 192, 192, 12
    $region9: #{tpu_custom_call.1} parent=1 // pred_fallthru
      _
    // Predicated region
    $region10: #{tpu_custom_call.1} parent=1 // pred_check
      _
    $region11: #{tpu_custom_call.1} parent=1 // pred_check_branch
      %37 = sbr.rel (0) target = $region13
    $region12: #{tpu_custom_call.1} parent=1 // pred_region
      %s39 = ssub.s32 3072, 3072
      %40 = vsyncadd [#allocation7], %s39
      %s41 = sshll.u32 [#allocation8], 4
      %s42 = int_to_ptr.vmem [resolvable:$true] %s41
      %47 = dma.hbm_to_vmem [thread:$0]  %s2, 3072, %s42, [#allocation7], 192, 192, 12
    $region13: #{tpu_custom_call.1} parent=1 // pred_fallthru
      _
    // Predicated region
    $region14: #{tpu_custom_call.1} parent=1 // pred_check
      _
    $region15: #{tpu_custom_call.1} parent=1 // pred_check_branch
      %49 = sbr.rel (0) target = $region17
    $region16: #{tpu_custom_call.1} parent=1 // pred_region
      _
    $region17: #{tpu_custom_call.1} parent=1 // pred_fallthru
      _
    // Predicated region
    $region18: #{tpu_custom_call.1} parent=1 // pred_check
      _
    $region19: #{tpu_custom_call.1} parent=1 // pred_check_branch
      %51 = sbr.rel (0) target = $region21
    $region20: #{tpu_custom_call.1} parent=1 // pred_region
      _
    $region21: #{tpu_custom_call.1} parent=1 // pred_fallthru
      _
    // Predicated region
    $region22: #{tpu_custom_call.1} parent=1 // pred_check
      _
    $region23: #{tpu_custom_call.1} parent=1 // pred_check_branch
      %53 = sbr.rel (0) target = $region25
    $region24: #{tpu_custom_call.1} parent=1 // pred_region
      _
    $region25: #{tpu_custom_call.1} parent=1 // pred_fallthru
      _
    // Predicated region
    $region26: #{tpu_custom_call.1} parent=1 // pred_check
      _
    $region27: #{tpu_custom_call.1} parent=1 // pred_check_branch
      %55 = sbr.rel (0) target = $region29
    $region28: #{tpu_custom_call.1} parent=1 // pred_region
      %56 = dma.done [#allocation4], 16
    $region29: #{tpu_custom_call.1} parent=1 // pred_fallthru
      _
    // Predicated region
    $region30: #{tpu_custom_call.1} parent=1 // pred_check
      _
    $region31: #{tpu_custom_call.1} parent=1 // pred_check_branch
      %58 = sbr.rel (0) target = $region33
    $region32: #{tpu_custom_call.1} parent=1 // pred_region
      %59 = dma.done [#allocation7], 384
    $region33: #{tpu_custom_call.1} parent=1 // pred_fallthru
      _
    // Predicated region
    $region34: #{tpu_custom_call.1} parent=1 // pred_check
      _
    $region35: #{tpu_custom_call.1} parent=1 // pred_check_branch
      %61 = sbr.rel (0) target = $region37
    $region36: #{tpu_custom_call.1} parent=1 // pred_region
      %62 = dma.done [#allocation7], 3072
    $region37: #{tpu_custom_call.1} parent=1 // pred_fallthru
      _
    %v64 = vld [vmem:[#allocation3] sm:$0x1]
    %v65 = vld [vmem:[#allocation6] sm:$0xff]
    %v66 = vld [vmem:[#allocation6 + $0x8] sm:$0xf]
    %v67 = vld [vmem:[#allocation6 + $0xc] sm:$0xff]
    %v68 = vld [vmem:[#allocation6 + $0x14] sm:$0xf]
    %v69 = vld [vmem:[%s3] sm:$0x7]
    %v74 = vunpack.c.l.b16 %v65
    %v75 = vunpack.c.h.b16 %v65
    %v76 = vunpack.c.l.b16 %v66
    %v77 = vunpack.c.l.b16 %v67
    %v78 = vunpack.c.h.b16 %v67
    %v79 = vunpack.c.l.b16 %v68
    %v80 = vpack.c.b16 %v77, %v74
    %v81 = vpack.c.b16 %v78, %v75
    %v82 = vpack.c.b16 %v79, %v76
    %v87 = vlaneseq
    %v88 = vshrl.u32 %v87, 7
    %v89 = vsub.s32 0, %v88
    %v90 = vrot.slane %v69, %v89
    %v91 = vlaneseq
    %v92 = vshrl.u32 %v91, 7
    %v93 = vsub.s32 1, %v92
    %v94 = vrot.slane %v69, %v93
    %v95 = vlaneseq
    %v96 = vshrl.u32 %v95, 7
    %v97 = vsub.s32 2, %v96
    %v98 = vrot.slane %v69, %v97
    %vm102 = vcmask 130048
    %v104 = vsel %vm102, %v64, 0
    %106 = vmatprep.subr.bf16.mxu0 %v81
    %107 = vmatpush1.bf16.msra.mxu0 %v80
    %108 = vmatprep.subr.bf16.mxu0 0
    %109 = vmatpush1.bf16.msra.mxu0 0
    %110 = vmatprep.subr.bf16.mxu0 0
    %111 = vmatpush1.bf16.msra.mxu0 0
    %112 = vmatprep.subr.bf16.mxu0 0
    %113 = vmatpush1.bf16.msra.mxu0 0
    %114 = vmatprep.subr.bf16.mxu0 0
    %115 = vmatpush1.bf16.msra.mxu0 0
    %116 = vmatprep.subr.bf16.mxu0 0
    %117 = vmatpush1.bf16.msra.mxu0 0
    %118 = vmatprep.subr.bf16.mxu0 0
    %119 = vmatpush1.bf16.msra.mxu0 0
    %120 = vmatprep.subr.bf16.mxu0 0
    %121 = vmatpush1.bf16.msra.mxu0 0
    %122 = vmatprep.subr.bf16.mxu0 0
    %123 = vmatpush1.bf16.msra.mxu0 0
    %124 = vmatprep.subr.bf16.mxu0 0
    %125 = vmatpush1.bf16.msra.mxu0 0
    %126 = vmatprep.subr.bf16.mxu0 0
    %127 = vmatpush1.bf16.msra.mxu0 0
    %128 = vmatprep.subr.bf16.mxu0 0
    %129 = vmatpush1.bf16.msra.mxu0 0
    %130 = vmatprep.subr.bf16.mxu0 0
    %131 = vmatpush1.bf16.msra.mxu0 0
    %132 = vmatprep.subr.bf16.mxu0 0
    %133 = vmatpush1.bf16.msra.mxu0 0
    %134 = vmatprep.subr.bf16.mxu0 0
    %135 = vmatpush1.bf16.msra.mxu0 0
    %136 = vmatprep.subr.bf16.mxu0 0
    %137 = vmatpush1.bf16.msra.mxu0 0
    %138 = vmatprep.mubr.bf16.mxu0 0
    %139 = vmatmul.mubr.bf16.gmra.mrb[0].mxu0 %v104
    %v140 = vpop.f32.mrb[0].mxu0
    %v141 = vadd.f32 %v90, %v140
    %v142 = vpop.f32.mrb[0].mxu0
    %v143 = vadd.f32 %v94, %v142
    %v144 = vpop.f32.mrb[0].mxu0
    %v145 = vpop.f32.mrb[0].mxu0
    %146 = vdwg.mxu0
    %147 = vmatprep.subr.bf16.mxu0 0
    %148 = vmatpush1.bf16.msra.mxu0 %v82
    %149 = vmatprep.subr.bf16.mxu0 0
    %150 = vmatpush1.bf16.msra.mxu0 0
    %151 = vmatprep.subr.bf16.mxu0 0
    %152 = vmatpush1.bf16.msra.mxu0 0
    %153 = vmatprep.subr.bf16.mxu0 0
    %154 = vmatpush1.bf16.msra.mxu0 0
    %155 = vmatprep.subr.bf16.mxu0 0
    %156 = vmatpush1.bf16.msra.mxu0 0
    %157 = vmatprep.subr.bf16.mxu0 0
    %158 = vmatpush1.bf16.msra.mxu0 0
    %159 = vmatprep.subr.bf16.mxu0 0
    %160 = vmatpush1.bf16.msra.mxu0 0
    %161 = vmatprep.subr.bf16.mxu0 0
    %162 = vmatpush1.bf16.msra.mxu0 0
    %163 = vmatprep.subr.bf16.mxu0 0
    %164 = vmatpush1.bf16.msra.mxu0 0
    %165 = vmatprep.subr.bf16.mxu0 0
    %166 = vmatpush1.bf16.msra.mxu0 0
    %167 = vmatprep.subr.bf16.mxu0 0
    %168 = vmatpush1.bf16.msra.mxu0 0
    %169 = vmatprep.subr.bf16.mxu0 0
    %170 = vmatpush1.bf16.msra.mxu0 0
    %171 = vmatprep.subr.bf16.mxu0 0
    %172 = vmatpush1.bf16.msra.mxu0 0
    %173 = vmatprep.subr.bf16.mxu0 0
    %174 = vmatpush1.bf16.msra.mxu0 0
    %175 = vmatprep.subr.bf16.mxu0 0
    %176 = vmatpush1.bf16.msra.mxu0 0
    %177 = vmatprep.subr.bf16.mxu0 0
    %178 = vmatpush1.bf16.msra.mxu0 0
    %179 = vmatprep.mubr.bf16.mxu0 0
    %180 = vmatmul.mubr.bf16.gmra.mrb[0].mxu0 %v104
    %v181 = vpop.f32.mrb[0].mxu0
    %v182 = vadd.f32 %v98, %v181
    %v183 = vpop.f32.mrb[0].mxu0
    %v184 = vpop.f32.mrb[0].mxu0
    %v185 = vpop.f32.mrb[0].mxu0
    %186 = vdwg.mxu0
    %v190 = vcombine.low %v141, %v143
    %v192 = vunpack.c.l.s4 1966171168
    %v193 = vunpack.c.0.s8 %v192
    %v194 = vlaneseq
    %v195 = vshrl.u32 %v194, 7
    %v196 = vsub.s32 %v193, %v195
    %v197 = vrot.slane %v190, %v196
    %v199 = vunpack.c.l.s4 1966171168
    %v200 = vunpack.c.0.s8 %v199
    %v201 = vlaneseq
    %v202 = vshrl.u32 %v201, 7
    %v203 = vsub.s32 %v200, %v202
    %v204 = vrot.slane %v182, %v203
    %v205 = vcombine.low %v197, %v204
    %v207 = vunpack.c.l.s4 1966171168
    %v208 = vunpack.c.0.s8 %v207
    %v209 = vlaneseq
    %v210 = vshrl.u32 %v209, 7
    %v211 = vsub.s32 %v208, %v210
    %v212 = vrot.slane %v205, %v211
    %v214 = vlaneseq
    %vm215 = vcmp.ge.s32.totalorder %v214, 0
    %vm216 = vcmp.lt.s32.totalorder %v214, 384
    %vm217 = vmand %vm215, %vm216
    %218 = vst.msk [vmem:[#allocation2] sm:$0x7] %vm217, %v212
    %v219 = vld [vmem:[%s4] sm:$0x1]
    %v220 = vld [vmem:[%s5] sm:$0x1]
    %v221 = vpack.c.bf16 %v220, %v220
    %v222 = vld [vmem:[#allocation8] sm:$0xff]
    %v223 = vld [vmem:[#allocation8 + $0x8] sm:$0xf]
    %v224 = vld [vmem:[#allocation8 + $0xc] sm:$0xff]
    %v225 = vld [vmem:[#allocation8 + $0x14] sm:$0xf]
    %v226 = vld [vmem:[#allocation8 + $0x18] sm:$0xff]
    %v227 = vld [vmem:[#allocation8 + $0x20] sm:$0xf]
    %v228 = vld [vmem:[#allocation8 + $0x24] sm:$0xff]
    %v229 = vld [vmem:[#allocation8 + $0x2c] sm:$0xf]
    %v230 = vld [vmem:[#allocation8 + $0x30] sm:$0xff]
    %v231 = vld [vmem:[#allocation8 + $0x38] sm:$0xf]
    %v232 = vld [vmem:[#allocation8 + $0x3c] sm:$0xff]
    %v233 = vld [vmem:[#allocation8 + $0x44] sm:$0xf]
    %v234 = vld [vmem:[#allocation8 + $0x48] sm:$0xff]
    %v235 = vld [vmem:[#allocation8 + $0x50] sm:$0xf]
    %v236 = vld [vmem:[#allocation8 + $0x54] sm:$0xff]
    %v237 = vld [vmem:[#allocation8 + $0x5c] sm:$0xf]
    %v238 = vld [vmem:[#allocation8 + $0x60] sm:$0xff]
    %v239 = vld [vmem:[#allocation8 + $0x68] sm:$0xf]
    %v240 = vld [vmem:[#allocation8 + $0x6c] sm:$0xff]
    %v241 = vld [vmem:[#allocation8 + $0x74] sm:$0xf]
    %v242 = vld [vmem:[#allocation8 + $0x78] sm:$0xff]
    %v243 = vld [vmem:[#allocation8 + $0x80] sm:$0xf]
    %v244 = vld [vmem:[#allocation8 + $0x84] sm:$0xff]
    %v245 = vld [vmem:[#allocation8 + $0x8c] sm:$0xf]
    %v246 = vld [vmem:[#allocation8 + $0x90] sm:$0xff]
    %v247 = vld [vmem:[#allocation8 + $0x98] sm:$0xf]
    %v248 = vld [vmem:[#allocation8 + $0x9c] sm:$0xff]
    %v249 = vld [vmem:[#allocation8 + $0xa4] sm:$0xf]
    %v250 = vld [vmem:[#allocation8 + $0xa8] sm:$0xff]
    %v251 = vld [vmem:[#allocation8 + $0xb0] sm:$0xf]
    %v252 = vld [vmem:[#allocation8 + $0xb4] sm:$0xff]
    %v253 = vld [vmem:[#allocation8 + $0xbc] sm:$0xf]
    %v286 = vunpack.c.l.b16 %v222
    %v287 = vunpack.c.h.b16 %v222
    %v288 = vunpack.c.l.b16 %v223
    %v289 = vunpack.c.l.b16 %v224
    %v290 = vunpack.c.h.b16 %v224
    %v291 = vunpack.c.l.b16 %v225
    %v292 = vunpack.c.l.b16 %v226
    %v293 = vunpack.c.h.b16 %v226
    %v294 = vunpack.c.l.b16 %v227
    %v295 = vunpack.c.l.b16 %v228
    %v296 = vunpack.c.h.b16 %v228
    %v297 = vunpack.c.l.b16 %v229
    %v298 = vunpack.c.l.b16 %v230
    %v299 = vunpack.c.h.b16 %v230
    %v300 = vunpack.c.l.b16 %v231
    %v301 = vunpack.c.l.b16 %v232
    %v302 = vunpack.c.h.b16 %v232
    %v303 = vunpack.c.l.b16 %v233
    %v304 = vunpack.c.l.b16 %v234
    %v305 = vunpack.c.h.b16 %v234
    %v306 = vunpack.c.l.b16 %v235
    %v307 = vunpack.c.l.b16 %v236
    %v308 = vunpack.c.h.b16 %v236
    %v309 = vunpack.c.l.b16 %v237
    %v310 = vunpack.c.l.b16 %v238
    %v311 = vunpack.c.h.b16 %v238
    %v312 = vunpack.c.l.b16 %v239
    %v313 = vunpack.c.l.b16 %v240
    %v314 = vunpack.c.h.b16 %v240
    %v315 = vunpack.c.l.b16 %v241
    %v316 = vunpack.c.l.b16 %v242
    %v317 = vunpack.c.h.b16 %v242
    %v318 = vunpack.c.l.b16 %v243
    %v319 = vunpack.c.l.b16 %v244
    %v320 = vunpack.c.h.b16 %v244
    %v321 = vunpack.c.l.b16 %v245
    %v322 = vunpack.c.l.b16 %v246
    %v323 = vunpack.c.h.b16 %v246
    %v324 = vunpack.c.l.b16 %v247
    %v325 = vunpack.c.l.b16 %v248
    %v326 = vunpack.c.h.b16 %v248
    %v327 = vunpack.c.l.b16 %v249
    %v328 = vunpack.c.l.b16 %v250
    %v329 = vunpack.c.h.b16 %v250
    %v330 = vunpack.c.l.b16 %v251
    %v331 = vunpack.c.l.b16 %v252
    %v332 = vunpack.c.h.b16 %v252
    %v333 = vunpack.c.l.b16 %v253
    %v334 = vpack.c.b16 %v289, %v286
    %v335 = vpack.c.b16 %v290, %v287
    %v336 = vpack.c.b16 %v291, %v288
    %v337 = vpack.c.b16 %v295, %v292
    %v338 = vpack.c.b16 %v296, %v293
    %v339 = vpack.c.b16 %v297, %v294
    %v340 = vpack.c.b16 %v301, %v298
    %v341 = vpack.c.b16 %v302, %v299
    %v342 = vpack.c.b16 %v303, %v300
    %v343 = vpack.c.b16 %v307, %v304
    %v344 = vpack.c.b16 %v308, %v305
    %v345 = vpack.c.b16 %v309, %v306
    %v346 = vpack.c.b16 %v313, %v310
    %v347 = vpack.c.b16 %v314, %v311
    %v348 = vpack.c.b16 %v315, %v312
    %v349 = vpack.c.b16 %v319, %v316
    %v350 = vpack.c.b16 %v320, %v317
    %v351 = vpack.c.b16 %v321, %v318
    %v352 = vpack.c.b16 %v325, %v322
    %v353 = vpack.c.b16 %v326, %v323
    %v354 = vpack.c.b16 %v327, %v324
    %v355 = vpack.c.b16 %v331, %v328
    %v356 = vpack.c.b16 %v332, %v329
    %v357 = vpack.c.b16 %v333, %v330
    %382 = vmatprep.subr.bf16.mxu0 %v335
    %383 = vmatpush1.bf16.msra.mxu0 %v334
    %384 = vmatprep.subr.bf16.mxu0 %v338
    %385 = vmatpush1.bf16.msra.mxu0 %v337
    %386 = vmatprep.subr.bf16.mxu0 %v341
    %387 = vmatpush1.bf16.msra.mxu0 %v340
    %388 = vmatprep.subr.bf16.mxu0 %v344
    %389 = vmatpush1.bf16.msra.mxu0 %v343
    %390 = vmatprep.subr.bf16.mxu0 %v347
    %391 = vmatpush1.bf16.msra.mxu0 %v346
    %392 = vmatprep.subr.bf16.mxu0 %v350
    %393 = vmatpush1.bf16.msra.mxu0 %v349
    %394 = vmatprep.subr.bf16.mxu0 %v353
    %395 = vmatpush1.bf16.msra.mxu0 %v352
    %396 = vmatprep.subr.bf16.mxu0 %v356
    %397 = vmatpush1.bf16.msra.mxu0 %v355
    %398 = vmatprep.subr.bf16.mxu0 0
    %399 = vmatpush1.bf16.msra.mxu0 0
    %400 = vmatprep.subr.bf16.mxu0 0
    %401 = vmatpush1.bf16.msra.mxu0 0
    %402 = vmatprep.subr.bf16.mxu0 0
    %403 = vmatpush1.bf16.msra.mxu0 0
    %404 = vmatprep.subr.bf16.mxu0 0
    %405 = vmatpush1.bf16.msra.mxu0 0
    %406 = vmatprep.subr.bf16.mxu0 0
    %407 = vmatpush1.bf16.msra.mxu0 0
    %408 = vmatprep.subr.bf16.mxu0 0
    %409 = vmatpush1.bf16.msra.mxu0 0
    %410 = vmatprep.subr.bf16.mxu0 0
    %411 = vmatpush1.bf16.msra.mxu0 0
    %412 = vmatprep.subr.bf16.mxu0 0
    %413 = vmatpush1.bf16.msra.mxu0 0
    %414 = vmatprep.mubr.bf16.mxu0 0
    %415 = vmatmul.mubr.bf16.gmra.mrb[0].mxu0 %v221
    %v416 = vpop.f32.mrb[0].mxu0
    %v417 = vadd.f32 0.0, %v416
    %v418 = vpop.f32.mrb[0].mxu0
    %v419 = vadd.f32 0.0, %v418
    %v420 = vpop.f32.mrb[0].mxu0
    %v421 = vpop.f32.mrb[0].mxu0
    %422 = vdwg.mxu0
    %423 = vmatprep.subr.bf16.mxu0 0
    %424 = vmatpush1.bf16.msra.mxu0 %v336
    %425 = vmatprep.subr.bf16.mxu0 0
    %426 = vmatpush1.bf16.msra.mxu0 %v339
    %427 = vmatprep.subr.bf16.mxu0 0
    %428 = vmatpush1.bf16.msra.mxu0 %v342
    %429 = vmatprep.subr.bf16.mxu0 0
    %430 = vmatpush1.bf16.msra.mxu0 %v345
    %431 = vmatprep.subr.bf16.mxu0 0
    %432 = vmatpush1.bf16.msra.mxu0 %v348
    %433 = vmatprep.subr.bf16.mxu0 0
    %434 = vmatpush1.bf16.msra.mxu0 %v351
    %435 = vmatprep.subr.bf16.mxu0 0
    %436 = vmatpush1.bf16.msra.mxu0 %v354
    %437 = vmatprep.subr.bf16.mxu0 0
    %438 = vmatpush1.bf16.msra.mxu0 %v357
    %439 = vmatprep.subr.bf16.mxu0 0
    %440 = vmatpush1.bf16.msra.mxu0 0
    %441 = vmatprep.subr.bf16.mxu0 0
    %442 = vmatpush1.bf16.msra.mxu0 0
    %443 = vmatprep.subr.bf16.mxu0 0
    %444 = vmatpush1.bf16.msra.mxu0 0
    %445 = vmatprep.subr.bf16.mxu0 0
    %446 = vmatpush1.bf16.msra.mxu0 0
    %447 = vmatprep.subr.bf16.mxu0 0
    %448 = vmatpush1.bf16.msra.mxu0 0
    %449 = vmatprep.subr.bf16.mxu0 0
    %450 = vmatpush1.bf16.msra.mxu0 0
    %451 = vmatprep.subr.bf16.mxu0 0
    %452 = vmatpush1.bf16.msra.mxu0 0
    %453 = vmatprep.subr.bf16.mxu0 0
    %454 = vmatpush1.bf16.msra.mxu0 0
    %455 = vmatprep.mubr.bf16.mxu0 0
    %456 = vmatmul.mubr.bf16.gmra.mrb[0].mxu0 %v221
    %v457 = vpop.f32.mrb[0].mxu0
    %v458 = vadd.f32 0.0, %v457
    %v459 = vpop.f32.mrb[0].mxu0
    %v460 = vpop.f32.mrb[0].mxu0
    %v461 = vpop.f32.mrb[0].mxu0
    %462 = vdwg.mxu0
    %v463 = vld [vmem:[#allocation2] sm:$0x7]
    %v464 = vadd.f32 %v463, %v417
    %v465 = vxor.u32 %v464, 2147483648
    %v466 = vmul.f32 %v465, 1.442695
    %v467 = vpow.pop %v466
    %v468 = vadd.f32 %v467, 1.0
    %v469 = vrcp.pop %v468
    %v470 = vmul.f32 1.0, %v469
    %v472 = vrot.slane %v463, 1
    %v474 = vadd.f32 %v472, %v419
    %v475 = vxor.u32 %v474, 2147483648
    %v476 = vmul.f32 %v475, 1.442695
    %v477 = vpow.pop %v476
    %v478 = vadd.f32 %v477, 1.0
    %v479 = vrcp.pop %v478
    %v480 = vmul.f32 1.0, %v479
    %v481 = vadd.f32 %v458, %v219
    %v482 = vmul.f32 %v470, %v481
    %v483 = vrot.slane %v463, 2
    %v485 = vadd.f32 %v483, %v482
    %v486 = vtanh.pop %v485
    %v487 = vsub.f32 1.0, %v480
    %v488 = vmul.f32 %v487, %v486
    %v489 = vmul.f32 %v480, %v220
    %v490 = vadd.f32 %v488, %v489
    %491 = vst [vmem:[#allocation9] sm:$0x1] %v490
    %v492 = vmul.f32 %v490, %v490
    %vm493 = vcmask 1040384
    %v494 = vsel %vm493, %v492, 0.0
    %495 = vadd.xlane.f32.xlu0 %v494
    %v496 = vpop.xlane.xlu0 %495
    %v497 = vrot.slane %v496, 4
    %v498 = vadd.f32 %v496, %v497
    %v499 = vrot.slane %v498, 2
    %v500 = vadd.f32 %v498, %v499
    %v501 = vrot.slane %v500, 1
    %v502 = vadd.f32 %v500, %v501
    %s503 = vtos %v502
    %v504 = vstv %s503
    %v505 = vadd.f32 %v504, 1e-12
    %v506 = vrsqrt.pop %v505
    %v507 = vmul.f32 %v490, %v506
    %508 = vst [vmem:[#allocation9 + $0x1] sm:$0x1] %v507
    %509 = vst [vmem:[#allocation9 + $0x2] sm:$0x3f] 0.0
    // Predicated region
    $region38: #{tpu_custom_call.1} parent=1 // pred_check
      _
    $region39: #{tpu_custom_call.1} parent=1 // pred_check_branch
      %511 = sbr.rel (0) target = $region41
    $region40: #{tpu_custom_call.1} parent=1 // pred_region
      %s513 = ssub.s32 128, 128
      %514 = vsyncadd [#allocation5], %s513
      %s516 = sshll.u32 [#allocation9], 4
      %s517 = int_to_ptr.vmem [resolvable:$true] %s516
      %519 = dma.vmem_to_hbm [thread:$0]  %s517, 128, %s6, [#allocation5]
    $region41: #{tpu_custom_call.1} parent=1 // pred_fallthru
      _
    // Predicated region
    $region42: #{tpu_custom_call.1} parent=1 // pred_check
      _
    $region43: #{tpu_custom_call.1} parent=1 // pred_check_branch
      %521 = sbr.rel (0) target = $region45
    $region44: #{tpu_custom_call.1} parent=1 // pred_region
      %522 = dma.done [#allocation5], 128
    $region45: #{tpu_custom_call.1} parent=1 // pred_fallthru
      _
    %523 = vsyncpa [#allocation4], 1
    %524 = vsyncpa [#allocation7], 1
    %525 = vsyncpa [#allocation5], 1

</llo_original>
